<compile_context>
chip_gen: v6e
topology: v6e:2x2x1
jax: 0.10.0
libtpu: 0.0.40
codegen_flags: <defaults>
</compile_context>

<pallas_src>
import jax
import jax.numpy as jnp
from jax.experimental import pallas as pl
from jax.experimental.pallas import tpu as pltpu  # noqa: F401  (TPU backend)


def _ar_fc_kernel(tx_ref, w1_ref, b1_ref, w2_ref, b2_ref, w3_ref, b3_ref,
                  out_ref, feat_ref):
    """Fused 3-layer MLP for all T task heads in one shot.

    tx_ref : (B, F+A)          fused input (mean-pooled x ++ auto_x)
    w1_ref : (F+A, T*H1)       per-task fc1 weights concatenated on out dim
    b1_ref : (1, T*H1)
    w2_ref : (T*H1, T*H2)      block-diagonal per-task fc2 weights
    b2_ref : (1, T*H2)
    w3_ref : (T*H2, T)         block-structured per-task fc3 weights
    b3_ref : (1, T)
    out_ref: (B, T)            per-task scalar outputs (lane-dense slab)
    feat_ref:(B, T*H2)         per-task feature vectors (lane-dense slab)
    """
    tx = tx_ref[...]                                                # (B, F+A)

    h1 = jnp.dot(tx, w1_ref[...],
                 preferred_element_type=jnp.float32) + b1_ref[...]  # (B, T*H1)
    h1 = jnp.maximum(h1, 0.0)                                       # relu(fc1)

    h2 = jnp.dot(h1, w2_ref[...],
                 preferred_element_type=jnp.float32) + b2_ref[...]  # (B, T*H2)
    h2 = jnp.maximum(h2, 0.0)                                       # relu(fc2)
    feat_ref[...] = h2                                              # feature_vecs

    out_ref[...] = jnp.dot(h2, w3_ref[...],
                           preferred_element_type=jnp.float32) + b3_ref[...]


def _pack_params(params):
    """Pack per-task (T, ...) weights into fused / block-diagonal matrices.

    In a real deployment this is done once at init, not per forward call.
    """
    T, inp_size, H1 = params["w1"].shape
    H2 = params["w2"].shape[2]

    # fc1: concat on output dim -> (F+A, T*H1); column block t == W1[t].
    w1f = jnp.concatenate([params["w1"][t] for t in range(T)], axis=1)
    b1f = params["b1"].reshape(1, T * H1)

    # fc2: block diagonal -> (T*H1, T*H2); zeros kill cross-task mixing.
    w2bd = jax.scipy.linalg.block_diag(*[params["w2"][t] for t in range(T)])
    b2f = params["b2"].reshape(1, T * H2)

    # fc3: block structured -> (T*H2, T); column t holds w3[t] in its rows.
    w3bd = jax.scipy.linalg.block_diag(*[params["w3"][t] for t in range(T)])
    b3f = params["b3"].reshape(1, T)

    return w1f, b1f, w2bd, b2f, w3bd, b3f


def autoregressive_fc_net(x, auto_x, params):
    """Pallas forward. x: (B, L, F) f32, auto_x: (B, A) f32.

    params: dict with stacked per-task weights:
        w1 (T, F+A, H1), b1 (T, 1, H1),
        w2 (T, H1, H2),  b2 (T, 1, H2),
        w3 (T, H2, 1),   b3 (T, 1, 1)
    Returns (outputs_list, feature_vecs_list, None) like the PyTorch module.
    """
    B, L, F = x.shape
    A = auto_x.shape[1]
    T, inp_size, H1 = params["w1"].shape
    H2 = params["w2"].shape[2]
    assert inp_size == F + A

    # Mean over inp_len and concat with auto_x: done once in the wrapper so
    # the kernel sees a single lane-dense (B, F+A) slab (layout plumbing).
    # TODO(synk): the PyTorch inp_len == 1 branch (no mean, 3-D concat) is
    # ill-defined for 3-D x and is not implemented; only inp_len > 1 is covered.
    xm = jnp.mean(x, axis=1)                                        # (B, F)
    tx = jnp.concatenate([xm, auto_x], axis=1)                      # (B, F+A)

    w1f, b1f, w2bd, b2f, w3bd, b3f = _pack_params(params)

    # Single invocation, no grid: all inputs/outputs (< 100 KiB total) live
    # fully in VMEM for the duration of the kernel.
    out, feat = pl.pallas_call(
        _ar_fc_kernel,
        out_shape=(
            jax.ShapeDtypeStruct((B, T), jnp.float32),        # per-task outputs
            jax.ShapeDtypeStruct((B, T * H2), jnp.float32),   # per-task features
        ),
    )(tx, w1f, b1f, w2bd, b2f, w3bd, b3f)

    outputs = [out[:, t] for t in range(T)]                   # each (B,)
    feature_vecs = [feat[:, t * H2:(t + 1) * H2] for t in range(T)]  # each (B, H2)
    return outputs, feature_vecs, None


def _linear_init(key, fan_in, fan_out):
    """Deterministic init mimicking nn.Linear (U(-1/sqrt(fan_in), 1/sqrt(fan_in)))."""
    kw, kb = jax.random.split(key)
    bound = 1.0 / jnp.sqrt(jnp.float32(fan_in))
    w = jax.random.uniform(kw, (fan_in, fan_out), jnp.float32, -bound, bound)
    b = jax.random.uniform(kb, (fan_out,), jnp.float32, -bound, bound)
    return w, b


def make_params(key, task_num, inp_size, h1=128, h2=16):
    w1s, b1s, w2s, b2s, w3s, b3s = [], [], [], [], [], []
    keys = jax.random.split(key, task_num)
    for t in range(task_num):
        k1, k2, k3 = jax.random.split(keys[t], 3)
        w1, b1 = _linear_init(k1, inp_size, h1)
        w2, b2 = _linear_init(k2, h1, h2)
        w3, b3 = _linear_init(k3, h2, 1)
        w1s.append(w1); b1s.append(b1)
        w2s.append(w2); b2s.append(b2)
        w3s.append(w3); b3s.append(b3)
    return {
        "w1": jnp.stack(w1s),                       # (T, inp_size, H1)
        "b1": jnp.stack(b1s)[:, None, :],           # (T, 1, H1)
        "w2": jnp.stack(w2s),                       # (T, H1, H2)
        "b2": jnp.stack(b2s)[:, None, :],           # (T, 1, H2)
        "w3": jnp.stack(w3s),                       # (T, H2, 1)
        "b3": jnp.stack(b3s)[:, None, :],           # (T, 1, 1)
    }


def _reference(x, auto_x, params):
    """Pure-JAX reference of the PyTorch forward (inp_len > 1 path)."""
    xm = jnp.mean(x, axis=1)
    tx = jnp.concatenate([xm, auto_x], axis=1)
    outs, feats = [], []
    T = params["w1"].shape[0]
    for t in range(T):
        h1 = jax.nn.relu(tx @ params["w1"][t] + params["b1"][t])
        h2 = jax.nn.relu(h1 @ params["w2"][t] + params["b2"][t])
        feats.append(h2)
        outs.append((h2 @ params["w3"][t] + params["b3"][t]).reshape(-1))
    return outs, feats


if __name__ == "__main__":
    # shape = (batch, inp_len, feat) as the module's __init__ expects.
    B, L, F = 8, 4, 16          # inp_len = 4 (> 1, so mean is taken), feat = 16
    A = 2                       # auto_x width -> inp_size = F + 2 = 18
    T = 3                       # task_num

    key = jax.random.PRNGKey(0)
    kx, ka, kp = jax.random.split(key, 3)
    x = jax.random.normal(kx, (B, L, F), jnp.float32)
    auto_x = jax.random.normal(ka, (B, A), jnp.float32)
    params = make_params(kp, T, F + A)

    outs, feats, extra = autoregressive_fc_net(x, auto_x, params)
    jax.block_until_ready(outs)
    jax.block_until_ready(feats)

    ref_outs, ref_feats = _reference(x, auto_x, params)
    for o, ro in zip(outs, ref_outs):
        assert o.shape == (B,)
        assert jnp.allclose(o, ro, atol=1e-5, rtol=1e-5)
    for f, rf in zip(feats, ref_feats):
        assert f.shape == (B, 16)
        assert jnp.allclose(f, rf, atol=1e-5, rtol=1e-5)
    assert extra is None

    print("KERNEL_OK")
</pallas_src>

<mosaic_0001>
module attributes {stable_mosaic.version = 11 : i64} {
  func.func @_ar_fc_kernel(%arg0: memref<8x18xf32, #tpu.memory_space<vmem>>, %arg1: memref<18x384xf32, #tpu.memory_space<vmem>>, %arg2: memref<1x384xf32, #tpu.memory_space<vmem>>, %arg3: memref<384x48xf32, #tpu.memory_space<vmem>>, %arg4: memref<1x48xf32, #tpu.memory_space<vmem>>, %arg5: memref<48x3xf32, #tpu.memory_space<vmem>>, %arg6: memref<1x3xf32, #tpu.memory_space<vmem>>, %arg7: memref<8x3xf32, #tpu.memory_space<vmem>>, %arg8: memref<8x48xf32, #tpu.memory_space<vmem>>) attributes {dimension_semantics = [], scalar_prefetch = 0 : i64, scratch_operands = 0 : i64, tpu.core_type = #tpu.core_type<tc>} {
    %c0 = arith.constant 0 : index
    %c0_0 = arith.constant 0 : index
    %0 = vector.load %arg0[%c0, %c0_0] : memref<8x18xf32, #tpu.memory_space<vmem>>, vector<8x18xf32>
    %c0_1 = arith.constant 0 : index
    %c0_2 = arith.constant 0 : index
    %1 = vector.load %arg1[%c0_1, %c0_2] : memref<18x384xf32, #tpu.memory_space<vmem>>, vector<18x384xf32>
    %cst = arith.constant dense<0.000000e+00> : vector<8x384xf32>
    %2 = tpu.matmul %0, %1, %cst {dimension_numbers = #tpu.dot_dimension_numbers<[1], [0], [0], [1], [0, 0, 1, 1], [], []>} : vector<8x18xf32>, vector<18x384xf32>, vector<8x384xf32> -> vector<8x384xf32>
    %c0_3 = arith.constant 0 : index
    %c0_4 = arith.constant 0 : index
    %3 = vector.load %arg2[%c0_3, %c0_4] : memref<1x384xf32, #tpu.memory_space<vmem>>, vector<1x384xf32>
    %4 = vector.broadcast %3 : vector<1x384xf32> to vector<8x384xf32>
    %5 = arith.addf %2, %4 : vector<8x384xf32>
    %cst_5 = arith.constant 0.000000e+00 : f32
    %6 = vector.broadcast %cst_5 : f32 to vector<8x384xf32>
    %7 = arith.maximumf %5, %6 : vector<8x384xf32>
    %c0_6 = arith.constant 0 : index
    %c0_7 = arith.constant 0 : index
    %8 = vector.load %arg3[%c0_6, %c0_7] : memref<384x48xf32, #tpu.memory_space<vmem>>, vector<384x48xf32>
    %cst_8 = arith.constant dense<0.000000e+00> : vector<8x48xf32>
    %9 = tpu.matmul %7, %8, %cst_8 {dimension_numbers = #tpu.dot_dimension_numbers<[1], [0], [0], [1], [0, 0, 1, 1], [], []>} : vector<8x384xf32>, vector<384x48xf32>, vector<8x48xf32> -> vector<8x48xf32>
    %c0_9 = arith.constant 0 : index
    %c0_10 = arith.constant 0 : index
    %10 = vector.load %arg4[%c0_9, %c0_10] : memref<1x48xf32, #tpu.memory_space<vmem>>, vector<1x48xf32>
    %11 = vector.broadcast %10 : vector<1x48xf32> to vector<8x48xf32>
    %12 = arith.addf %9, %11 : vector<8x48xf32>
    %cst_11 = arith.constant 0.000000e+00 : f32
    %13 = vector.broadcast %cst_11 : f32 to vector<8x48xf32>
    %14 = arith.maximumf %12, %13 : vector<8x48xf32>
    %c0_12 = arith.constant 0 : index
    %c0_13 = arith.constant 0 : index
    %15 = vector.load %arg8[%c0_12, %c0_13] : memref<8x48xf32, #tpu.memory_space<vmem>>, vector<8x48xf32>
    tpu.vector_store %arg8[%c0_12, %c0_13], %14 {strides = array<i32>} : memref<8x48xf32, #tpu.memory_space<vmem>>, vector<8x48xf32>,
    %c0_14 = arith.constant 0 : index
    %c0_15 = arith.constant 0 : index
    %16 = vector.load %arg5[%c0_14, %c0_15] : memref<48x3xf32, #tpu.memory_space<vmem>>, vector<48x3xf32>
    %cst_16 = arith.constant dense<0.000000e+00> : vector<8x3xf32>
    %17 = tpu.matmul %14, %16, %cst_16 {dimension_numbers = #tpu.dot_dimension_numbers<[1], [0], [0], [1], [0, 0, 1, 1], [], []>} : vector<8x48xf32>, vector<48x3xf32>, vector<8x3xf32> -> vector<8x3xf32>
    %c0_17 = arith.constant 0 : index
    %c0_18 = arith.constant 0 : index
    %18 = vector.load %arg6[%c0_17, %c0_18] : memref<1x3xf32, #tpu.memory_space<vmem>>, vector<1x3xf32>
    %19 = vector.broadcast %18 : vector<1x3xf32> to vector<8x3xf32>
    %20 = arith.addf %17, %19 : vector<8x3xf32>
    %c0_19 = arith.constant 0 : index
    %c0_20 = arith.constant 0 : index
    %21 = vector.load %arg7[%c0_19, %c0_20] : memref<8x3xf32, #tpu.memory_space<vmem>>, vector<8x3xf32>
    tpu.vector_store %arg7[%c0_19, %c0_20], %20 {strides = array<i32>} : memref<8x3xf32, #tpu.memory_space<vmem>>, vector<8x3xf32>,
    return
  }
}

</mosaic_0001>

<llo_original>
// kernel: tpu_custom_call.1
$region0: #{tpu_custom_call.1}
  #allocation0 [shape = 'u32[]', space=smem, size = 0x4, offset = 0x4, fixed_abs, tag = 'smem constant byte address 0x4 - core index']
  #allocation1 [shape = 'u32[144,128]{1,0:T(1,128)}', space=vmem, size = 0x12000, scoped, tag = 'internal scratch']
  %s0 = inlined_call_operand.vmem [shape: f32[8,18], index: 0, kind: input, shape index: {}]
  %s1 = inlined_call_operand.vmem [shape: f32[18,384], index: 1, kind: input, shape index: {}]
  %s2 = inlined_call_operand.vmem [shape: f32[1,384], index: 2, kind: input, shape index: {}]
  %s3 = inlined_call_operand.vmem [shape: f32[384,48], index: 3, kind: input, shape index: {}]
  %s4 = inlined_call_operand.vmem [shape: f32[1,48], index: 4, kind: input, shape index: {}]
  %s5 = inlined_call_operand.vmem [shape: f32[48,3], index: 5, kind: input, shape index: {}]
  %s6 = inlined_call_operand.vmem [shape: f32[1,3], index: 6, kind: input, shape index: {}]
  %s7 = inlined_call_operand.vmem [shape: f32[8,3], index: 7, kind: output, shape index: {0}]
  %s8 = inlined_call_operand.hbm [shape: f32[8,48], index: 8, kind: output, shape index: {1}]
  %9 = xla_tuple %s7, %s8
  %s10 = sld [smem:[#allocation0]]
  $region46: #{tpu_custom_call.1} parent=0
    _
  %s12 = ssub.s32 1, %s10
  %s13 = scalar_select 0, %s12, %s10
  $region1: #{tpu_custom_call.1} parent=0
    #allocation2 [shape = 'u8[4096]{0}', space=vmem, size = 0x1000, scoped, tag = 'output window, operand 1, single buffered']
    #allocation3 [shape = 's32[1]{0}', space=sflag, size = 0x4, scoped, tag = 'scoped memory for tpu_custom_call.1']
    %14 = vsyncpa [#allocation3], 0
    // Predicated region
    $region2: #{tpu_custom_call.1} parent=1 // pred_check
      _
    $region3: #{tpu_custom_call.1} parent=1 // pred_check_branch
      %16 = sbr.rel (0) target = $region5
    $region4: #{tpu_custom_call.1} parent=1 // pred_region
      _
    $region5: #{tpu_custom_call.1} parent=1 // pred_fallthru
      _
    // Predicated region
    $region6: #{tpu_custom_call.1} parent=1 // pred_check
      _
    $region7: #{tpu_custom_call.1} parent=1 // pred_check_branch
      %18 = sbr.rel (0) target = $region9
    $region8: #{tpu_custom_call.1} parent=1 // pred_region
      _
    $region9: #{tpu_custom_call.1} parent=1 // pred_fallthru
      _
    // Predicated region
    $region10: #{tpu_custom_call.1} parent=1 // pred_check
      _
    $region11: #{tpu_custom_call.1} parent=1 // pred_check_branch
      %20 = sbr.rel (0) target = $region13
    $region12: #{tpu_custom_call.1} parent=1 // pred_region
      _
    $region13: #{tpu_custom_call.1} parent=1 // pred_fallthru
      _
    // Predicated region
    $region14: #{tpu_custom_call.1} parent=1 // pred_check
      _
    $region15: #{tpu_custom_call.1} parent=1 // pred_check_branch
      %22 = sbr.rel (0) target = $region17
    $region16: #{tpu_custom_call.1} parent=1 // pred_region
      _
    $region17: #{tpu_custom_call.1} parent=1 // pred_fallthru
      _
    // Predicated region
    $region18: #{tpu_custom_call.1} parent=1 // pred_check
      _
    $region19: #{tpu_custom_call.1} parent=1 // pred_check_branch
      %24 = sbr.rel (0) target = $region21
    $region20: #{tpu_custom_call.1} parent=1 // pred_region
      _
    $region21: #{tpu_custom_call.1} parent=1 // pred_fallthru
      _
    // Predicated region
    $region22: #{tpu_custom_call.1} parent=1 // pred_check
      _
    $region23: #{tpu_custom_call.1} parent=1 // pred_check_branch
      %26 = sbr.rel (0) target = $region25
    $region24: #{tpu_custom_call.1} parent=1 // pred_region
      _
    $region25: #{tpu_custom_call.1} parent=1 // pred_fallthru
      _
    // Predicated region
    $region26: #{tpu_custom_call.1} parent=1 // pred_check
      _
    $region27: #{tpu_custom_call.1} parent=1 // pred_check_branch
      %28 = sbr.rel (0) target = $region29
    $region28: #{tpu_custom_call.1} parent=1 // pred_region
      _
    $region29: #{tpu_custom_call.1} parent=1 // pred_fallthru
      _
    %v29 = vld [vmem:[%s0] sm:$0xff]
    %v30 = vld [vmem:[%s1] sm:$0xff]
    %v31 = vld [vmem:[%s1 + $0x8] sm:$0xff]
    %v32 = vld [vmem:[%s1 + $0x10] sm:$0xff]
    %v33 = vld [vmem:[%s1 + $0x18] sm:$0xff]
    %v34 = vld [vmem:[%s1 + $0x20] sm:$0xff]
    %v35 = vld [vmem:[%s1 + $0x28] sm:$0xff]
    %v36 = vld [vmem:[%s1 + $0x30] sm:$0x3]
    %v37 = vld [vmem:[%s1 + $0x38] sm:$0x3]
    %v38 = vld [vmem:[%s1 + $0x40] sm:$0x3]
    %v39 = vld [vmem:[%s2] sm:$0x7]
    %v41 = vlaneseq
    %v42 = vshrl.u32 %v41, 7
    %v43 = vsub.s32 0, %v42
    %v44 = vrot.slane %v39, %v43
    %v45 = vlaneseq
    %v46 = vshrl.u32 %v45, 7
    %v47 = vsub.s32 1, %v46
    %v48 = vrot.slane %v39, %v47
    %v49 = vlaneseq
    %v50 = vshrl.u32 %v49, 7
    %v51 = vsub.s32 2, %v50
    %v52 = vrot.slane %v39, %v51
    %vm56 = vcmask 146432
    %v58 = vsel %vm56, %v29, 0
    %vm60 = vcmask 1041408
    %v62 = vsel %vm60, %v36, 0
    %v65 = vsel %vm60, %v37, 0
    %v68 = vsel %vm60, %v38, 0
    %70 = vmatprep.subr.mxu0 0.0
    %71 = vmatpush1.msra.mxu0 0.0
    %72 = vmatprep.subr.mxu0 0.0
    %73 = vmatpush1.msra.mxu0 0.0
    %74 = vmatprep.subr.mxu0 0.0
    %75 = vmatpush1.msra.mxu0 0.0
    %76 = vmatprep.subr.mxu0 0.0
    %77 = vmatpush1.msra.mxu0 0.0
    %78 = vmatprep.subr.mxu0 0.0
    %79 = vmatpush1.msra.mxu0 0.0
    %80 = vmatprep.subr.mxu0 0.0
    %81 = vmatpush1.msra.mxu0 0.0
    %82 = vmatprep.subr.mxu0 0.0
    %83 = vmatpush1.msra.mxu0 0.0
    %84 = vmatprep.subr.mxu0 0.0
    %85 = vmatpush1.msra.mxu0 0.0
    %86 = vmatprep.subr.mxu0 0.0
    %87 = vmatpush1.msra.mxu0 0.0
    %88 = vmatprep.subr.mxu0 0.0
    %89 = vmatpush1.msra.mxu0 0.0
    %90 = vmatprep.subr.mxu0 0.0
    %91 = vmatpush1.msra.mxu0 0.0
    %92 = vmatprep.subr.mxu0 0.0
    %93 = vmatpush1.msra.mxu0 0.0
    %94 = vmatprep.subr.mxu0 0.0
    %95 = vmatpush1.msra.mxu0 0.0
    %96 = vmatprep.subr.mxu0 %v65
    %97 = vmatpush1.msra.mxu0 %v62
    %98 = vmatprep.subr.mxu0 %v34
    %99 = vmatpush1.msra.mxu0 %v33
    %100 = vmatprep.subr.mxu0 %v31
    %101 = vmatpush1.msra.mxu0 %v30
    %102 = vmatprep.subr.mxu0 0.0
    %103 = vmatpush2.msra.mxu0 0.0
    %104 = vmatprep.subr.mxu0 0.0
    %105 = vmatpush2.msra.mxu0 0.0
    %106 = vmatprep.subr.mxu0 0.0
    %107 = vmatpush2.msra.mxu0 0.0
    %108 = vmatprep.subr.mxu0 0.0
    %109 = vmatpush2.msra.mxu0 0.0
    %110 = vmatprep.subr.mxu0 0.0
    %111 = vmatpush2.msra.mxu0 0.0
    %112 = vmatprep.subr.mxu0 0.0
    %113 = vmatpush2.msra.mxu0 0.0
    %114 = vmatprep.subr.mxu0 0.0
    %115 = vmatpush2.msra.mxu0 0.0
    %116 = vmatprep.subr.mxu0 0.0
    %117 = vmatpush2.msra.mxu0 0.0
    %118 = vmatprep.subr.mxu0 0.0
    %119 = vmatpush2.msra.mxu0 0.0
    %120 = vmatprep.subr.mxu0 0.0
    %121 = vmatpush2.msra.mxu0 0.0
    %122 = vmatprep.subr.mxu0 0.0
    %123 = vmatpush2.msra.mxu0 0.0
    %124 = vmatprep.subr.mxu0 0.0
    %125 = vmatpush2.msra.mxu0 0.0
    %126 = vmatprep.subr.mxu0 0.0
    %127 = vmatpush2.msra.mxu0 0.0
    %128 = vmatprep.subr.mxu0 0.0
    %129 = vmatpush2.msra.mxu0 0.0
    %130 = vmatprep.subr.mxu0 0.0
    %131 = vmatpush2.msra.mxu0 0.0
    %132 = vmatprep.subr.mxu0 0.0
    %133 = vmatpush2.msra.mxu0 0.0
    %134 = vmatprep.mubr.f32.mxu0 0.0
    %135 = vmatmul.mubr.f32.gmra.mxu0 %v58
    %v136 = vpop.f32.mrf.mxu0
    %v137 = vadd.f32 %v44, %v136
    %v138 = vpop.f32.mrf.mxu0
    %v139 = vadd.f32 %v48, %v138
    %140 = vdwg.mxu0
    %141 = vmatprep.subr.mxu0 0.0
    %142 = vmatpush1.msra.mxu0 0.0
    %143 = vmatprep.subr.mxu0 0.0
    %144 = vmatpush1.msra.mxu0 0.0
    %145 = vmatprep.subr.mxu0 0.0
    %146 = vmatpush1.msra.mxu0 0.0
    %147 = vmatprep.subr.mxu0 0.0
    %148 = vmatpush1.msra.mxu0 0.0
    %149 = vmatprep.subr.mxu0 0.0
    %150 = vmatpush1.msra.mxu0 0.0
    %151 = vmatprep.subr.mxu0 0.0
    %152 = vmatpush1.msra.mxu0 0.0
    %153 = vmatprep.subr.mxu0 0.0
    %154 = vmatpush1.msra.mxu0 0.0
    %155 = vmatprep.subr.mxu0 0.0
    %156 = vmatpush1.msra.mxu0 0.0
    %157 = vmatprep.subr.mxu0 0.0
    %158 = vmatpush1.msra.mxu0 0.0
    %159 = vmatprep.subr.mxu0 0.0
    %160 = vmatpush1.msra.mxu0 0.0
    %161 = vmatprep.subr.mxu0 0.0
    %162 = vmatpush1.msra.mxu0 0.0
    %163 = vmatprep.subr.mxu0 0.0
    %164 = vmatpush1.msra.mxu0 0.0
    %165 = vmatprep.subr.mxu0 0.0
    %166 = vmatpush1.msra.mxu0 0.0
    %167 = vmatprep.subr.mxu0 0.0
    %168 = vmatpush1.msra.mxu0 %v68
    %169 = vmatprep.subr.mxu0 0.0
    %170 = vmatpush1.msra.mxu0 %v35
    %171 = vmatprep.subr.mxu0 0.0
    %172 = vmatpush1.msra.mxu0 %v32
    %173 = vmatprep.subr.mxu0 0.0
    %174 = vmatpush2.msra.mxu0 0.0
    %175 = vmatprep.subr.mxu0 0.0
    %176 = vmatpush2.msra.mxu0 0.0
    %177 = vmatprep.subr.mxu0 0.0
    %178 = vmatpush2.msra.mxu0 0.0
    %179 = vmatprep.subr.mxu0 0.0
    %180 = vmatpush2.msra.mxu0 0.0
    %181 = vmatprep.subr.mxu0 0.0
    %182 = vmatpush2.msra.mxu0 0.0
    %183 = vmatprep.subr.mxu0 0.0
    %184 = vmatpush2.msra.mxu0 0.0
    %185 = vmatprep.subr.mxu0 0.0
    %186 = vmatpush2.msra.mxu0 0.0
    %187 = vmatprep.subr.mxu0 0.0
    %188 = vmatpush2.msra.mxu0 0.0
    %189 = vmatprep.subr.mxu0 0.0
    %190 = vmatpush2.msra.mxu0 0.0
    %191 = vmatprep.subr.mxu0 0.0
    %192 = vmatpush2.msra.mxu0 0.0
    %193 = vmatprep.subr.mxu0 0.0
    %194 = vmatpush2.msra.mxu0 0.0
    %195 = vmatprep.subr.mxu0 0.0
    %196 = vmatpush2.msra.mxu0 0.0
    %197 = vmatprep.subr.mxu0 0.0
    %198 = vmatpush2.msra.mxu0 0.0
    %199 = vmatprep.subr.mxu0 0.0
    %200 = vmatpush2.msra.mxu0 0.0
    %201 = vmatprep.subr.mxu0 0.0
    %202 = vmatpush2.msra.mxu0 0.0
    %203 = vmatprep.subr.mxu0 0.0
    %204 = vmatpush2.msra.mxu0 0.0
    %205 = vmatprep.mubr.f32.mxu0 0.0
    %206 = vmatmul.mubr.f32.gmra.mxu0 %v58
    %v207 = vpop.f32.mrf.mxu0
    %v208 = vadd.f32 %v52, %v207
    %v209 = vpop.f32.mrf.mxu0
    %210 = vdwg.mxu0
    %v211 = vmax.f32 %v137, 0.0
    %v212 = vmax.f32 %v139, 0.0
    %v213 = vmax.f32 %v208, 0.0
    %v214 = vld [vmem:[%s3] sm:$0xff]
    %v215 = vld [vmem:[%s3 + $0x8] sm:$0xff]
    %v216 = vld [vmem:[%s3 + $0x10] sm:$0xff]
    %v217 = vld [vmem:[%s3 + $0x18] sm:$0xff]
    %v218 = vld [vmem:[%s3 + $0x20] sm:$0xff]
    %v219 = vld [vmem:[%s3 + $0x28] sm:$0xff]
    %v220 = vld [vmem:[%s3 + $0x30] sm:$0xff]
    %v221 = vld [vmem:[%s3 + $0x38] sm:$0xff]
    %v222 = vld [vmem:[%s3 + $0x40] sm:$0xff]
    %v223 = vld [vmem:[%s3 + $0x48] sm:$0xff]
    %v224 = vld [vmem:[%s3 + $0x50] sm:$0xff]
    %v225 = vld [vmem:[%s3 + $0x58] sm:$0xff]
    %v226 = vld [vmem:[%s3 + $0x60] sm:$0xff]
    %v227 = vld [vmem:[%s3 + $0x68] sm:$0xff]
    %v228 = vld [vmem:[%s3 + $0x70] sm:$0xff]
    %v229 = vld [vmem:[%s3 + $0x78] sm:$0xff]
    %v230 = vld [vmem:[%s3 + $0x80] sm:$0xff]
    %v231 = vld [vmem:[%s3 + $0x88] sm:$0xff]
    %v232 = vld [vmem:[%s3 + $0x90] sm:$0xff]
    %v233 = vld [vmem:[%s3 + $0x98] sm:$0xff]
    %v234 = vld [vmem:[%s3 + $0xa0] sm:$0xff]
    %v235 = vld [vmem:[%s3 + $0xa8] sm:$0xff]
    %v236 = vld [vmem:[%s3 + $0xb0] sm:$0xff]
    %v237 = vld [vmem:[%s3 + $0xb8] sm:$0xff]
    %v238 = vld [vmem:[%s3 + $0xc0] sm:$0xff]
    %v239 = vld [vmem:[%s3 + $0xc8] sm:$0xff]
    %v240 = vld [vmem:[%s3 + $0xd0] sm:$0xff]
    %v241 = vld [vmem:[%s3 + $0xd8] sm:$0xff]
    %v242 = vld [vmem:[%s3 + $0xe0] sm:$0xff]
    %v243 = vld [vmem:[%s3 + $0xe8] sm:$0xff]
    %v244 = vld [vmem:[%s3 + $0xf0] sm:$0xff]
    %v245 = vld [vmem:[%s3 + $0xf8] sm:$0xff]
    %v246 = vld [vmem:[%s3 + $0x100] sm:$0xff]
    %v247 = vld [vmem:[%s3 + $0x108] sm:$0xff]
    %v248 = vld [vmem:[%s3 + $0x110] sm:$0xff]
    %v249 = vld [vmem:[%s3 + $0x118] sm:$0xff]
    %v250 = vld [vmem:[%s3 + $0x120] sm:$0xff]
    %v251 = vld [vmem:[%s3 + $0x128] sm:$0xff]
    %v252 = vld [vmem:[%s3 + $0x130] sm:$0xff]
    %v253 = vld [vmem:[%s3 + $0x138] sm:$0xff]
    %v254 = vld [vmem:[%s3 + $0x140] sm:$0xff]
    %v255 = vld [vmem:[%s3 + $0x148] sm:$0xff]
    %v256 = vld [vmem:[%s3 + $0x150] sm:$0xff]
    %v257 = vld [vmem:[%s3 + $0x158] sm:$0xff]
    %v258 = vld [vmem:[%s3 + $0x160] sm:$0xff]
    %v259 = vld [vmem:[%s3 + $0x168] sm:$0xff]
    %v260 = vld [vmem:[%s3 + $0x170] sm:$0xff]
    %v261 = vld [vmem:[%s3 + $0x178] sm:$0xff]
    %v262 = vld [vmem:[%s4] sm:$0x1]
    %v264 = vlaneseq
    %v265 = vshrl.u32 %v264, 7
    %v266 = vsub.s32 0, %v265
    %v267 = vrot.slane %v262, %v266
    %269 = vmatprep.subr.mxu0 0.0
    %270 = vmatpush1.msra.mxu0 %v229
    %271 = vmatprep.subr.mxu0 0.0
    %272 = vmatpush1.msra.mxu0 %v228
    %273 = vmatprep.subr.mxu0 0.0
    %274 = vmatpush1.msra.mxu0 %v227
    %275 = vmatprep.subr.mxu0 0.0
    %276 = vmatpush1.msra.mxu0 %v226
    %277 = vmatprep.subr.mxu0 0.0
    %278 = vmatpush1.msra.mxu0 %v225
    %279 = vmatprep.subr.mxu0 0.0
    %280 = vmatpush1.msra.mxu0 %v224
    %281 = vmatprep.subr.mxu0 0.0
    %282 = vmatpush1.msra.mxu0 %v223
    %283 = vmatprep.subr.mxu0 0.0
    %284 = vmatpush1.msra.mxu0 %v222
    %285 = vmatprep.subr.mxu0 0.0
    %286 = vmatpush1.msra.mxu0 %v221
    %287 = vmatprep.subr.mxu0 0.0
    %288 = vmatpush1.msra.mxu0 %v220
    %289 = vmatprep.subr.mxu0 0.0
    %290 = vmatpush1.msra.mxu0 %v219
    %291 = vmatprep.subr.mxu0 0.0
    %292 = vmatpush1.msra.mxu0 %v218
    %293 = vmatprep.subr.mxu0 0.0
    %294 = vmatpush1.msra.mxu0 %v217
    %295 = vmatprep.subr.mxu0 0.0
    %296 = vmatpush1.msra.mxu0 %v216
    %297 = vmatprep.subr.mxu0 0.0
    %298 = vmatpush1.msra.mxu0 %v215
    %299 = vmatprep.subr.mxu0 0.0
    %300 = vmatpush1.msra.mxu0 %v214
    %301 = vmatprep.subr.mxu0 0.0
    %302 = vmatpush2.msra.mxu0 %v245
    %303 = vmatprep.subr.mxu0 0.0
    %304 = vmatpush2.msra.mxu0 %v244
    %305 = vmatprep.subr.mxu0 0.0
    %306 = vmatpush2.msra.mxu0 %v243
    %307 = vmatprep.subr.mxu0 0.0
    %308 = vmatpush2.msra.mxu0 %v242
    %309 = vmatprep.subr.mxu0 0.0
    %310 = vmatpush2.msra.mxu0 %v241
    %311 = vmatprep.subr.mxu0 0.0
    %312 = vmatpush2.msra.mxu0 %v240
    %313 = vmatprep.subr.mxu0 0.0
    %314 = vmatpush2.msra.mxu0 %v239
    %315 = vmatprep.subr.mxu0 0.0
    %316 = vmatpush2.msra.mxu0 %v238
    %317 = vmatprep.subr.mxu0 0.0
    %318 = vmatpush2.msra.mxu0 %v237
    %319 = vmatprep.subr.mxu0 0.0
    %320 = vmatpush2.msra.mxu0 %v236
    %321 = vmatprep.subr.mxu0 0.0
    %322 = vmatpush2.msra.mxu0 %v235
    %323 = vmatprep.subr.mxu0 0.0
    %324 = vmatpush2.msra.mxu0 %v234
    %325 = vmatprep.subr.mxu0 0.0
    %326 = vmatpush2.msra.mxu0 %v233
    %327 = vmatprep.subr.mxu0 0.0
    %328 = vmatpush2.msra.mxu0 %v232
    %329 = vmatprep.subr.mxu0 0.0
    %330 = vmatpush2.msra.mxu0 %v231
    %331 = vmatprep.subr.mxu0 0.0
    %332 = vmatpush2.msra.mxu0 %v230
    %333 = vmatprep.mubr.f32.mxu0 %v212
    %334 = vmatmul.mubr.f32.gmra.mxu0 %v211
    %v335 = vpop.f32.mrf.mxu0
    %v336 = vadd.f32 %v267, %v335
    %v337 = vpop.f32.mrf.mxu0
    %338 = vdwg.mxu0
    %339 = vmatprep.subr.mxu0 0.0
    %340 = vmatpush1.msra.mxu0 %v261
    %341 = vmatprep.subr.mxu0 0.0
    %342 = vmatpush1.msra.mxu0 %v260
    %343 = vmatprep.subr.mxu0 0.0
    %344 = vmatpush1.msra.mxu0 %v259
    %345 = vmatprep.subr.mxu0 0.0
    %346 = vmatpush1.msra.mxu0 %v258
    %347 = vmatprep.subr.mxu0 0.0
    %348 = vmatpush1.msra.mxu0 %v257
    %349 = vmatprep.subr.mxu0 0.0
    %350 = vmatpush1.msra.mxu0 %v256
    %351 = vmatprep.subr.mxu0 0.0
    %352 = vmatpush1.msra.mxu0 %v255
    %353 = vmatprep.subr.mxu0 0.0
    %354 = vmatpush1.msra.mxu0 %v254
    %355 = vmatprep.subr.mxu0 0.0
    %356 = vmatpush1.msra.mxu0 %v253
    %357 = vmatprep.subr.mxu0 0.0
    %358 = vmatpush1.msra.mxu0 %v252
    %359 = vmatprep.subr.mxu0 0.0
    %360 = vmatpush1.msra.mxu0 %v251
    %361 = vmatprep.subr.mxu0 0.0
    %362 = vmatpush1.msra.mxu0 %v250
    %363 = vmatprep.subr.mxu0 0.0
    %364 = vmatpush1.msra.mxu0 %v249
    %365 = vmatprep.subr.mxu0 0.0
    %366 = vmatpush1.msra.mxu0 %v248
    %367 = vmatprep.subr.mxu0 0.0
    %368 = vmatpush1.msra.mxu0 %v247
    %369 = vmatprep.subr.mxu0 0.0
    %370 = vmatpush1.msra.mxu0 %v246
    %371 = vmatprep.subr.mxu0 0.0
    %372 = vmatpush2.msra.mxu0 0.0
    %373 = vmatprep.subr.mxu0 0.0
    %374 = vmatpush2.msra.mxu0 0.0
    %375 = vmatprep.subr.mxu0 0.0
    %376 = vmatpush2.msra.mxu0 0.0
    %377 = vmatprep.subr.mxu0 0.0
    %378 = vmatpush2.msra.mxu0 0.0
    %379 = vmatprep.subr.mxu0 0.0
    %380 = vmatpush2.msra.mxu0 0.0
    %381 = vmatprep.subr.mxu0 0.0
    %382 = vmatpush2.msra.mxu0 0.0
    %383 = vmatprep.subr.mxu0 0.0
    %384 = vmatpush2.msra.mxu0 0.0
    %385 = vmatprep.subr.mxu0 0.0
    %386 = vmatpush2.msra.mxu0 0.0
    %387 = vmatprep.subr.mxu0 0.0
    %388 = vmatpush2.msra.mxu0 0.0
    %389 = vmatprep.subr.mxu0 0.0
    %390 = vmatpush2.msra.mxu0 0.0
    %391 = vmatprep.subr.mxu0 0.0
    %392 = vmatpush2.msra.mxu0 0.0
    %393 = vmatprep.subr.mxu0 0.0
    %394 = vmatpush2.msra.mxu0 0.0
    %395 = vmatprep.subr.mxu0 0.0
    %396 = vmatpush2.msra.mxu0 0.0
    %397 = vmatprep.subr.mxu0 0.0
    %398 = vmatpush2.msra.mxu0 0.0
    %399 = vmatprep.subr.mxu0 0.0
    %400 = vmatpush2.msra.mxu0 0.0
    %401 = vmatprep.subr.mxu0 0.0
    %402 = vmatpush2.msra.mxu0 0.0
    %403 = vmatprep.mubr.f32.mxu0 0.0
    %404 = vmatmul.mubr.f32.gmra.mxu0 %v213
    %v405 = vpop.f32.mrf.mxu0
    %v406 = vadd.f32 %v336, %v405
    %v407 = vpop.f32.mrf.mxu0
    %408 = vdwg.mxu0
    %v409 = vmax.f32 %v406, 0.0
    %vm410 = vcmask 392192
    %411 = vst.msk [vmem:[#allocation2] sm:$0xff] %vm410, %v409
    %v412 = vld [vmem:[%s5] sm:$0xff]
    %v413 = vld [vmem:[%s5 + $0x8] sm:$0xff]
    %v414 = vld [vmem:[%s5 + $0x10] sm:$0xff]
    %v415 = vld [vmem:[%s5 + $0x18] sm:$0xff]
    %v416 = vld [vmem:[%s5 + $0x20] sm:$0xff]
    %v417 = vld [vmem:[%s5 + $0x28] sm:$0xff]
    %v418 = vld [vmem:[%s6] sm:$0x1]
    %v420 = vlaneseq
    %v421 = vshrl.u32 %v420, 7
    %v422 = vsub.s32 0, %v421
    %v423 = vrot.slane %v418, %v422
    %v426 = vsel %vm410, %v409, 0
    %428 = vmatprep.subr.mxu0 0.0
    %429 = vmatpush1.msra.mxu0 0.0
    %430 = vmatprep.subr.mxu0 0.0
    %431 = vmatpush1.msra.mxu0 0.0
    %432 = vmatprep.subr.mxu0 0.0
    %433 = vmatpush1.msra.mxu0 0.0
    %434 = vmatprep.subr.mxu0 0.0
    %435 = vmatpush1.msra.mxu0 0.0
    %436 = vmatprep.subr.mxu0 0.0
    %437 = vmatpush1.msra.mxu0 0.0
    %438 = vmatprep.subr.mxu0 0.0
    %439 = vmatpush1.msra.mxu0 0.0
    %440 = vmatprep.subr.mxu0 0.0
    %441 = vmatpush1.msra.mxu0 0.0
    %442 = vmatprep.subr.mxu0 0.0
    %443 = vmatpush1.msra.mxu0 0.0
    %444 = vmatprep.subr.mxu0 0.0
    %445 = vmatpush1.msra.mxu0 0.0
    %446 = vmatprep.subr.mxu0 0.0
    %447 = vmatpush1.msra.mxu0 0.0
    %448 = vmatprep.subr.mxu0 0.0
    %449 = vmatpush1.msra.mxu0 %v417
    %450 = vmatprep.subr.mxu0 0.0
    %451 = vmatpush1.msra.mxu0 %v416
    %452 = vmatprep.subr.mxu0 0.0
    %453 = vmatpush1.msra.mxu0 %v415
    %454 = vmatprep.subr.mxu0 0.0
    %455 = vmatpush1.msra.mxu0 %v414
    %456 = vmatprep.subr.mxu0 0.0
    %457 = vmatpush1.msra.mxu0 %v413
    %458 = vmatprep.subr.mxu0 0.0
    %459 = vmatpush1.msra.mxu0 %v412
    %460 = vmatprep.subr.mxu0 0.0
    %461 = vmatpush2.msra.mxu0 0.0
    %462 = vmatprep.subr.mxu0 0.0
    %463 = vmatpush2.msra.mxu0 0.0
    %464 = vmatprep.subr.mxu0 0.0
    %465 = vmatpush2.msra.mxu0 0.0
    %466 = vmatprep.subr.mxu0 0.0
    %467 = vmatpush2.msra.mxu0 0.0
    %468 = vmatprep.subr.mxu0 0.0
    %469 = vmatpush2.msra.mxu0 0.0
    %470 = vmatprep.subr.mxu0 0.0
    %471 = vmatpush2.msra.mxu0 0.0
    %472 = vmatprep.subr.mxu0 0.0
    %473 = vmatpush2.msra.mxu0 0.0
    %474 = vmatprep.subr.mxu0 0.0
    %475 = vmatpush2.msra.mxu0 0.0
    %476 = vmatprep.subr.mxu0 0.0
    %477 = vmatpush2.msra.mxu0 0.0
    %478 = vmatprep.subr.mxu0 0.0
    %479 = vmatpush2.msra.mxu0 0.0
    %480 = vmatprep.subr.mxu0 0.0
    %481 = vmatpush2.msra.mxu0 0.0
    %482 = vmatprep.subr.mxu0 0.0
    %483 = vmatpush2.msra.mxu0 0.0
    %484 = vmatprep.subr.mxu0 0.0
    %485 = vmatpush2.msra.mxu0 0.0
    %486 = vmatprep.subr.mxu0 0.0
    %487 = vmatpush2.msra.mxu0 0.0
    %488 = vmatprep.subr.mxu0 0.0
    %489 = vmatpush2.msra.mxu0 0.0
    %490 = vmatprep.subr.mxu0 0.0
    %491 = vmatpush2.msra.mxu0 0.0
    %492 = vmatprep.mubr.f32.mxu0 0.0
    %493 = vmatmul.mubr.f32.gmra.mxu0 %v426
    %v494 = vpop.f32.mrf.mxu0
    %v495 = vadd.f32 %v423, %v494
    %v496 = vpop.f32.mrf.mxu0
    %497 = vdwg.mxu0
    %vm498 = vcmask 23552
    %499 = vst.msk [vmem:[%s7] sm:$0xff] %vm498, %v495
    // Predicated region
    $region30: #{tpu_custom_call.1} parent=1 // pred_check
      _
    $region31: #{tpu_custom_call.1} parent=1 // pred_check_branch
      %501 = sbr.rel (0) target = $region33
    $region32: #{tpu_custom_call.1} parent=1 // pred_region
      _
    $region33: #{tpu_custom_call.1} parent=1 // pred_fallthru
      _
    // Predicated region
    $region34: #{tpu_custom_call.1} parent=1 // pred_check
      _
    $region35: #{tpu_custom_call.1} parent=1 // pred_check_branch
      %503 = sbr.rel (0) target = $region37
    $region36: #{tpu_custom_call.1} parent=1 // pred_region
      %s505 = ssub.s32 128, 128
      %506 = vsyncadd [#allocation3], %s505
      %s508 = sshll.u32 [#allocation2], 4
      %s509 = int_to_ptr.vmem [resolvable:$true] %s508
      %511 = dma.vmem_to_hbm [thread:$0]  %s509, 128, %s8, [#allocation3]
    $region37: #{tpu_custom_call.1} parent=1 // pred_fallthru
      _
    // Predicated region
    $region38: #{tpu_custom_call.1} parent=1 // pred_check
      _
    $region39: #{tpu_custom_call.1} parent=1 // pred_check_branch
      %513 = sbr.rel (0) target = $region41
    $region40: #{tpu_custom_call.1} parent=1 // pred_region
      _
    $region41: #{tpu_custom_call.1} parent=1 // pred_fallthru
      _
    // Predicated region
    $region42: #{tpu_custom_call.1} parent=1 // pred_check
      _
    $region43: #{tpu_custom_call.1} parent=1 // pred_check_branch
      %515 = sbr.rel (0) target = $region45
    $region44: #{tpu_custom_call.1} parent=1 // pred_region
      %516 = dma.done [#allocation3], 128
    $region45: #{tpu_custom_call.1} parent=1 // pred_fallthru
      _
    %517 = vsyncpa [#allocation3], 1

</llo_original>
